<compile_context>
chip_gen: v6e
topology: v6e:2x2x1
jax: 0.10.0
libtpu: 0.0.40
codegen_flags: <defaults>
</compile_context>

<pallas_src>
import functools
import math

import jax
import jax.numpy as jnp
from jax.experimental import pallas as pl
from jax.experimental.pallas import tpu as pltpu


# --------------------------------------------------------------------------
# Kernel body
# --------------------------------------------------------------------------
def _relu_or_gelu_kernel(x_ref, o_ref, *, activate_type: str, use_tanh: bool):
    x = x_ref[...]
    if activate_type == "relu":
        o_ref[...] = jnp.maximum(x, jnp.zeros_like(x))
        return

    # GELU — compute in f32 regardless of input dtype.
    xf = x.astype(jnp.float32)
    if use_tanh:
        # tanh-approx GELU: tanh lowers to the EUP slot (free vs VALU).
        # Parity note: differs from torch.nn.GELU(approximate='none') by
        # < bf16 ULP; only used for sub-32-bit dtypes.
        c = 0.7978845608028654          # sqrt(2/pi)
        inner = c * (xf + 0.044715 * xf * xf * xf)
        y = 0.5 * xf * (1.0 + jnp.tanh(inner))
    else:
        # Exact erf GELU (PyTorch parity) for f32.
        y = 0.5 * xf * (1.0 + jax.lax.erf(xf * (1.0 / math.sqrt(2.0))))
    o_ref[...] = y.astype(o_ref.dtype)


# --------------------------------------------------------------------------
# Host-side tiling helpers
# --------------------------------------------------------------------------
_SUBLANE = {4: 8, 2: 16, 1: 32}     # min sublane multiple per element size
_LANE_CAP = 8192                    # widest lane extent we bother with
_PAD_THRESHOLD = 1 << 17            # elements; above this, pad beats vst.msk


def _chip_config():
    """(block_bytes, vmem_limit_bytes_or_None, num_tensorcores)."""
    try:
        kind = jax.devices()[0].device_kind.lower()
    except Exception:  # pragma: no cover - CPU/interpret fallbacks
        kind = ""
    if "v7" in kind:
        # 8 MiB blocks: 2 bufs x (in+out) x 8 MiB = 32 MiB; VMEM is 64 MiB.
        return 8 << 20, 48 << 20, 2
    if "v6" in kind:
        # 4 MiB blocks; raise scoped VMEM (physical is 128 MiB).
        return 4 << 20, 64 << 20, 1
    # v5e / unknown: 2 MiB blocks fit the 16 MiB scoped default.
    return 2 << 20, None, 1


def _pick_lane_dense_cols(n: int) -> int | None:
    """Largest multiple of 128 <= _LANE_CAP that divides n, or None."""
    if n % 128 != 0:
        return None
    start = min(_LANE_CAP, n)
    start -= start % 128
    for c in range(start, 127, -128):
        if n % c == 0:
            return c
    return None


def _largest_divisor(n: int, cap: int) -> int:
    """Largest divisor of n that is <= cap (n assumed 'small')."""
    best = 1
    i = 1
    while i * i <= n:
        if n % i == 0:
            for d in (i, n // i):
                if d <= cap and d > best:
                    best = d
        i += 1
    return best


def _row_tile(rows: int, cols: int, itemsize: int, block_bytes: int,
              num_tc: int) -> int:
    """Byte-budgeted sublane tile, megacore-aware on multi-TC chips."""
    sub = _SUBLANE.get(itemsize, 8)
    if rows <= sub:
        return rows  # full extent on the sublane axis (legal for any size)

    tr = max(1, block_bytes // (cols * itemsize))
    tr = min(tr, rows)
    tr = max(sub, (tr // sub) * sub)

    if num_tc >= 2:
        nsteps = pl.cdiv(rows, tr)
        # Split single-block work across both TensorCores when possible, and
        # keep the step count even so neither core idles on the last step.
        if nsteps == 1 and rows >= 2 * sub:
            nsteps = 2
        if nsteps > 1 and nsteps % 2 == 1:
            nsteps += 1
        tr = pl.cdiv(pl.cdiv(rows, nsteps), sub) * sub
        tr = max(sub, min(tr, rows))
    return tr


def _run_kernel_2d(x2: jax.Array, activate_type: str, use_tanh: bool,
                   block_bytes: int, vmem_limit, num_tc: int,
                   donate_input: bool) -> jax.Array:
    rows, cols = x2.shape
    itemsize = jnp.dtype(x2.dtype).itemsize
    tr = _row_tile(rows, cols, itemsize, block_bytes, num_tc)
    grid = (pl.cdiv(rows, tr),)

    kernel = functools.partial(_relu_or_gelu_kernel,
                               activate_type=activate_type,
                               use_tanh=use_tanh)

    cp_kwargs = dict(dimension_semantics=("parallel",))
    if vmem_limit is not None:
        cp_kwargs["vmem_limit_bytes"] = int(vmem_limit)

    call_kwargs = {}
    if donate_input:
        call_kwargs["input_output_aliases"] = {0: 0}

    return pl.pallas_call(
        kernel,
        out_shape=jax.ShapeDtypeStruct((rows, cols), x2.dtype),
        grid_spec=pltpu.PrefetchScalarGridSpec(
            num_scalar_prefetch=0,
            grid=grid,
            in_specs=[pl.BlockSpec((tr, cols), lambda i: (i, 0))],
            out_specs=pl.BlockSpec((tr, cols), lambda i: (i, 0)),
        ),
        compiler_params=pltpu.CompilerParams(**cp_kwargs),
        **call_kwargs,
    )(x2)


# --------------------------------------------------------------------------
# Public wrapper
# --------------------------------------------------------------------------
def relu_or_gelu(x: jax.Array, activate_type: str,
                 *, donate_input: bool = False) -> jax.Array:
    """Apply relu or gelu (erf for f32, tanh-approx for bf16/f16) elementwise."""
    if activate_type not in ("relu", "gelu"):
        # TODO(synk): PyTorch module silently returns None for unknown types;
        # we fail loudly instead.
        raise ValueError(f"unknown activate_type: {activate_type}")

    orig_shape = x.shape
    n = x.size
    if n == 0:
        return x

    itemsize = jnp.dtype(x.dtype).itemsize
    use_tanh = (activate_type == "gelu") and (itemsize < 4)
    block_bytes, vmem_limit, num_tc = _chip_config()

    # --- lane-dense path: cols is a multiple of 128 dividing n -------------
    cols = _pick_lane_dense_cols(n)
    if cols is not None:
        x2 = x.reshape(n // cols, cols)
        out = _run_kernel_2d(x2, activate_type, use_tanh, block_bytes,
                             vmem_limit, num_tc, donate_input)
        return out.reshape(orig_shape)

    # --- n % 128 != 0 -------------------------------------------------------
    if n >= _PAD_THRESHOLD:
        # Large ragged tensor: one-time flat pad to a multiple of 1024 so every
        # store is an unmasked full-lane vst (beats the vst.msk path despite
        # the extra HBM pass of the pad/slice).
        pad = (-n) % 1024
        flat = jnp.pad(x.reshape(-1), (0, pad))
        x2 = flat.reshape(-1, 1024)
        out = _run_kernel_2d(x2, activate_type, use_tanh, block_bytes,
                             vmem_limit, num_tc, donate_input=False)
        return out.reshape(-1)[:n].reshape(orig_shape)

    # Small ragged tensor: full-extent lane view (legal; masked stores are
    # irrelevant at this size). Pick the widest divisor <= cap for the lanes.
    cols = _largest_divisor(n, _LANE_CAP)
    x2 = x.reshape(n // cols, cols)
    out = _run_kernel_2d(x2, activate_type, use_tanh, block_bytes,
                         vmem_limit, num_tc, donate_input)
    return out.reshape(orig_shape)


# --------------------------------------------------------------------------
# Reference + self-test
# --------------------------------------------------------------------------
def _ref_relu_or_gelu(x, activate_type):
    if activate_type == "relu":
        return jnp.maximum(x, jnp.zeros_like(x))
    xf = x.astype(jnp.float32)
    y = xf * 0.5 * (1.0 + jax.lax.erf(xf / math.sqrt(2.0)))
    return y.astype(x.dtype)


if __name__ == "__main__":
    ok = True

    def check(name, out, ref, atol, rtol):
        global ok
        o = out.astype(jnp.float32)
        r = ref.astype(jnp.float32)
        if not jnp.allclose(o, r, atol=atol, rtol=rtol):
            ok = False
            print(f"MISMATCH {name}: max err = {float(jnp.max(jnp.abs(o - r)))}")

    # Transformer-hidden-like activation: (batch, seq, hidden).
    x_f32 = jax.random.normal(jax.random.PRNGKey(0), (2, 8, 32), dtype=jnp.float32)
    for act in ("relu", "gelu"):
        out = jax.block_until_ready(relu_or_gelu(x_f32, act))
        check(f"f32/{act}", out, _ref_relu_or_gelu(x_f32, act), 1e-5, 1e-5)

    # Awkward small shape: exercises the ragged / full-extent-lane fallback.
    x_odd = jax.random.normal(jax.random.PRNGKey(1), (3, 5, 7), dtype=jnp.float32)
    for act in ("relu", "gelu"):
        out = jax.block_until_ready(relu_or_gelu(x_odd, act))
        check(f"odd/{act}", out, _ref_relu_or_gelu(x_odd, act), 1e-5, 1e-5)

    # Large ragged shape: exercises the pad-to-1024 lane-dense path.
    x_big = jax.random.normal(jax.random.PRNGKey(3), (3, 333, 257), dtype=jnp.float32)
    for act in ("relu", "gelu"):
        out = jax.block_until_ready(relu_or_gelu(x_big, act))
        check(f"pad/{act}", out, _ref_relu_or_gelu(x_big, act), 1e-5, 1e-5)

    # bf16 gelu: kernel uses tanh-approx (EUP-routed); compare vs exact erf ref.
    x_bf16 = jax.random.normal(jax.random.PRNGKey(2), (2, 8, 32)).astype(jnp.bfloat16)
    out = jax.block_until_ready(relu_or_gelu(x_bf16, "gelu"))
    check("bf16/gelu", out, _ref_relu_or_gelu(x_bf16, "gelu"), 1e-2, 1e-2)

    if ok:
        print("KERNEL_OK")
</pallas_src>

<mosaic_0001>
module attributes {stable_mosaic.version = 11 : i64} {
  func.func @_relu_or_gelu_kernel(%arg0: i32, %arg1: memref<1x512xf32, #tpu.memory_space<vmem>>, %arg2: memref<1x512xf32, #tpu.memory_space<vmem>>) attributes {dimension_semantics = [#tpu.dimension_semantics<parallel>], iteration_bounds = array<i64: 1>, scalar_prefetch = 0 : i64, scratch_operands = 0 : i64, tpu.core_type = #tpu.core_type<tc>, window_params = [{transform_indices = @transform_0, window_bounds = array<i64: 1, 512>}, {transform_indices = @transform_1, window_bounds = array<i64: 1, 512>}]} {
    %c0 = arith.constant 0 : index
    %c0_0 = arith.constant 0 : index
    %0 = vector.load %arg1[%c0, %c0_0] : memref<1x512xf32, #tpu.memory_space<vmem>>, vector<1x512xf32>
    %cst = arith.constant 0.000000e+00 : f32
    %1 = vector.broadcast %cst : f32 to vector<1x512xf32>
    %2 = arith.maximumf %0, %1 : vector<1x512xf32>
    %c0_1 = arith.constant 0 : index
    %c0_2 = arith.constant 0 : index
    %3 = vector.load %arg2[%c0_1, %c0_2] : memref<1x512xf32, #tpu.memory_space<vmem>>, vector<1x512xf32>
    tpu.vector_store %arg2[%c0_1, %c0_2], %2 {strides = array<i32>} : memref<1x512xf32, #tpu.memory_space<vmem>>, vector<1x512xf32>,
    return
  }
  func.func @transform_0(%arg0: i32) -> (i32, i32) {
    %c0_i32 = arith.constant 0 : i32
    %c0_i32_0 = arith.constant 0 : i32
    return %arg0, %c0_i32 : i32, i32
  }
  func.func @transform_1(%arg0: i32) -> (i32, i32) {
    %c0_i32 = arith.constant 0 : i32
    %c0_i32_0 = arith.constant 0 : i32
    return %arg0, %c0_i32 : i32, i32
  }
}

</mosaic_0001>

<llo_original>
// kernel: tpu_custom_call.1
$region0: #{tpu_custom_call.1}
  #allocation0 [shape = 'u32[]', space=smem, size = 0x4, offset = 0x4, fixed_abs, tag = 'smem constant byte address 0x4 - core index']
  #allocation1 [shape = 'u32[144,128]{1,0:T(1,128)}', space=vmem, size = 0x12000, scoped, tag = 'internal scratch']
  %s0 = inlined_call_operand.hbm [shape: f32[1,512], index: 0, kind: input, shape index: {}]
  %s1 = inlined_call_operand.hbm [shape: f32[1,512], index: 1, kind: output, shape index: {}]
  %s2 = sld [smem:[#allocation0]]
  $region18: #{tpu_custom_call.1} parent=0
    _
  %s4 = ssub.s32 1, %s2
  %s5 = scalar_select 0, %s4, %s2
  $region1: #{tpu_custom_call.1} parent=0
    #allocation2 [shape = 'u8[2048]{0}', space=vmem, size = 0x800, scoped, tag = 'input window, operand 0, single buffered']
    #allocation3 [shape = 's32[1]{0}', space=sflag, size = 0x4, scoped, tag = 'scoped memory for tpu_custom_call.1']
    #allocation4 [shape = 's32[1]{0}', space=sflag, size = 0x4, scoped, tag = 'scoped memory for tpu_custom_call.1']
    #allocation5 [shape = 'u8[2048]{0}', space=vmem, size = 0x800, scoped, tag = 'output window, operand 0, single buffered']
    %6 = vsyncpa [#allocation3], 0
    %7 = vsyncpa [#allocation4], 0
    // Predicated region
    $region2: #{tpu_custom_call.1} parent=1 // pred_check
      _
    $region3: #{tpu_custom_call.1} parent=1 // pred_check_branch
      %9 = sbr.rel (0) target = $region5
    $region4: #{tpu_custom_call.1} parent=1 // pred_region
      %s11 = ssub.s32 64, 64
      %12 = vsyncadd [#allocation3], %s11
      %s14 = sshll.u32 [#allocation2], 4
      %s15 = int_to_ptr.vmem [resolvable:$true] %s14
      %17 = dma.hbm_to_vmem [thread:$0]  %s0, 64, %s15, [#allocation3]
    $region5: #{tpu_custom_call.1} parent=1 // pred_fallthru
      _
    // Predicated region
    $region6: #{tpu_custom_call.1} parent=1 // pred_check
      _
    $region7: #{tpu_custom_call.1} parent=1 // pred_check_branch
      %19 = sbr.rel (0) target = $region9
    $region8: #{tpu_custom_call.1} parent=1 // pred_region
      %20 = dma.done [#allocation3], 64
    $region9: #{tpu_custom_call.1} parent=1 // pred_fallthru
      _
    %v21 = vld [vmem:[#allocation2] sm:$0xf]
    %v22 = vmax.f32 %v21, 0.0
    %v23 = vlaneseq
    %vm24 = vcmp.ge.s32.totalorder %v23, 0
    %vm25 = vcmp.lt.s32.totalorder %v23, 512
    %vm26 = vmand %vm24, %vm25
    %27 = vst.msk [vmem:[#allocation5] sm:$0xf] %vm26, %v22
    // Predicated region
    $region10: #{tpu_custom_call.1} parent=1 // pred_check
      _
    $region11: #{tpu_custom_call.1} parent=1 // pred_check_branch
      %29 = sbr.rel (0) target = $region13
    $region12: #{tpu_custom_call.1} parent=1 // pred_region
      %s31 = ssub.s32 64, 64
      %32 = vsyncadd [#allocation4], %s31
      %s34 = sshll.u32 [#allocation5], 4
      %s35 = int_to_ptr.vmem [resolvable:$true] %s34
      %37 = dma.vmem_to_hbm [thread:$0]  %s35, 64, %s1, [#allocation4]
    $region13: #{tpu_custom_call.1} parent=1 // pred_fallthru
      _
    // Predicated region
    $region14: #{tpu_custom_call.1} parent=1 // pred_check
      _
    $region15: #{tpu_custom_call.1} parent=1 // pred_check_branch
      %39 = sbr.rel (0) target = $region17
    $region16: #{tpu_custom_call.1} parent=1 // pred_region
      %40 = dma.done [#allocation4], 64
    $region17: #{tpu_custom_call.1} parent=1 // pred_fallthru
      _
    %41 = vsyncpa [#allocation3], 1
    %42 = vsyncpa [#allocation4], 1

</llo_original>
